<compile_context>
chip_gen: v7x
topology: tpu7x:2x2x1
jax: 0.10.0
libtpu: 0.0.40
codegen_flags: <defaults>
</compile_context>

<pallas_src>
import functools

import jax
import jax.numpy as jnp
from jax.experimental import pallas as pl
from jax.experimental.pallas import tpu as pltpu


def _round_up(x, m):
    return (x + m - 1) // m * m


def predictor_kernel(x_ref, w_ref, out_ref, *, T, BP, D, H):
    """Single-program kernel: LSTM recurrence + final linear layer.

    x_ref   : (T*BP, D)     time-major flattened inputs (rows t*BP:(t+1)*BP = step t)
    w_ref   : (RTOT, NCOL)  packed weight slab (see make_predictor for layout)
    out_ref : (BP, NCOL)    lane-dense padded prediction (real data in [:B, :O])
    """
    F = 4 * H

    # Load the packed slab once; all row offsets are 8-sublane aligned.
    w = w_ref[...]
    wih = w[0:D, 0:F]                         # (D, 4H)  W_ih^T, order [i,f,o,2g]
    whh = w[D:D + H, 0:F]                     # (H, 4H)  W_hh^T, order [i,f,o,2g]
    b = w[D + H:D + H + 1, 0:F]               # (1, 4H)  b_ih + b_hh, same order
    wout = w[D + H + 8:D + 2 * H + 8, :]      # (H, NCOL) W_out^T, lane padded
    bout = w[D + 2 * H + 8:D + 2 * H + 9, :]  # (1, NCOL) b_out,  lane padded

    # --- Hoisted work (off the serial recurrence path) -----------------------
    # One input-projection matmul for every timestep + bias, done once.
    gates_in = (jnp.dot(x_ref[...], wih,
                        preferred_element_type=jnp.float32) + b)   # (T*BP, 4H)

    # hidden0 = None -> zero initial hidden / cell state (PyTorch default).
    # TODO(synk): accept a caller-provided (h0, c0) if hidden0 is ever non-None.
    h = jnp.zeros((BP, H), jnp.float32)
    c = jnp.zeros((BP, H), jnp.float32)

    # --- Recurrence: fully unrolled (T is small & static) --------------------
    for t in range(T):
        # (8, 4H) whole-vreg slice (t*BP is sublane aligned) + recurrent matmul.
        g = gates_in[t * BP:(t + 1) * BP, :] + jnp.dot(
            h, whh, preferred_element_type=jnp.float32)             # (BP, 4H)
        # ONE sigmoid over all 4H lanes; g-gate columns were pre-scaled by 2, so
        # tanh(z) = 2*sigmoid(2z) - 1 recovers the cell candidate exactly.
        s = jax.nn.sigmoid(g)
        i_t = s[:, 0 * H:1 * H]
        f_t = s[:, 1 * H:2 * H]
        o_t = s[:, 2 * H:3 * H]
        g_t = 2.0 * s[:, 3 * H:4 * H] - 1.0
        c = f_t * c + i_t * g_t
        h = o_t * jnp.tanh(c)

    # output_layer(output[:, -1, :]) == Linear applied to last hidden state.
    # Lane-dense (BP, NCOL) store; wrapper slices back to (B, O).
    out_ref[...] = (jnp.dot(h, wout, preferred_element_type=jnp.float32) + bout)


def _pack_params(wih_t, whh_t, b, wout_t, bout):
    """One-time weight prep: permute/scale gate columns and pack into one slab.

    Inputs are in PyTorch layout: wih_t (D,4H)=W_ih^T, whh_t (H,4H)=W_hh^T,
    b (1,4H)=b_ih+b_hh with gate order [i,f,g,o]; wout_t (H,O)=W_out^T; bout (1,O).

    Slab row layout (all offsets multiples of 8 sublanes):
      [0      , D      ) : W_ih^T   (gate order [i,f,o,2*g])
      [D      , D+H    ) : W_hh^T   (gate order [i,f,o,2*g])
      [D+H    , D+H+1  ) : bias     (gate order [i,f,o,2*g]), rows to D+H+8 zero
      [D+H+8  , D+2H+8 ) : W_out^T  zero-padded to NCOL lanes
      [D+2H+8 , D+2H+9 ) : b_out    zero-padded to NCOL lanes, rows to end zero
    """
    D = wih_t.shape[0]
    H = whh_t.shape[0]
    O = wout_t.shape[1]
    F = 4 * H
    NCOL = max(_round_up(F, 128), _round_up(O, 128))

    def prep_gates(w):
        # [i, f, g, o] -> [i, f, o, 2*g]
        return jnp.concatenate(
            [w[:, 0:2 * H], w[:, 3 * H:4 * H], 2.0 * w[:, 2 * H:3 * H]], axis=1)

    def pad_cols(w):
        return jnp.pad(w, ((0, 0), (0, NCOL - w.shape[1])))

    wih_p = pad_cols(prep_gates(wih_t))     # (D, NCOL)
    whh_p = pad_cols(prep_gates(whh_t))     # (H, NCOL)
    b_p = pad_cols(prep_gates(b))           # (1, NCOL)
    wout_p = pad_cols(wout_t)               # (H, NCOL)
    bout_p = pad_cols(bout)                 # (1, NCOL)

    slab = jnp.concatenate(
        [wih_p,
         whh_p,
         b_p, jnp.zeros((7, NCOL), jnp.float32),
         wout_p,
         bout_p, jnp.zeros((7, NCOL), jnp.float32)],
        axis=0).astype(jnp.float32)         # (D + 2H + 16, NCOL)
    return slab, NCOL


def make_predictor(wih_t, whh_t, b, wout_t, bout):
    """Init-time setup: pack weights once, return a jitted forward(x) callable."""
    D = wih_t.shape[0]
    H = whh_t.shape[0]
    O = wout_t.shape[1]
    slab, NCOL = _pack_params(wih_t, whh_t, b, wout_t, bout)

    @jax.jit
    def forward(x_btd):
        B, T, Dx = x_btd.shape
        BP = _round_up(max(B, 8), 8)

        # Time-major, batch padded to a sublane-aligned BP, flattened:
        # rows t*BP:(t+1)*BP hold timestep t for all (padded) batch rows.
        x_tm = jnp.transpose(x_btd, (1, 0, 2))                 # (T, B, D)
        x_tm = jnp.pad(x_tm, ((0, 0), (0, BP - B), (0, 0)))    # (T, BP, D)
        x_flat = x_tm.reshape(T * BP, Dx).astype(jnp.float32)  # (T*BP, D)

        kernel = functools.partial(predictor_kernel, T=T, BP=BP, D=D, H=H)
        vmem = pl.BlockSpec(memory_space=pltpu.MemorySpace.VMEM)
        out_pad = pl.pallas_call(
            kernel,
            out_shape=jax.ShapeDtypeStruct((BP, NCOL), jnp.float32),
            in_specs=[vmem, vmem],
            out_specs=vmem,
        )(x_flat, slab)
        return out_pad[:B, :O]

    return forward


def lstm_reference(x_btd, wih_t, whh_t, b, wout_t, bout):
    """Pure-JAX reference mirroring torch.nn.LSTM + Linear (PyTorch gate order)."""
    B, T, D = x_btd.shape
    H = whh_t.shape[0]
    h = jnp.zeros((B, H), jnp.float32)
    c = jnp.zeros((B, H), jnp.float32)
    for t in range(T):
        gates = x_btd[:, t, :] @ wih_t + h @ whh_t + b
        i = jax.nn.sigmoid(gates[:, 0 * H:1 * H])
        f = jax.nn.sigmoid(gates[:, 1 * H:2 * H])
        g = jnp.tanh(gates[:, 2 * H:3 * H])
        o = jax.nn.sigmoid(gates[:, 3 * H:4 * H])
        c = f * c + i * g
        h = o * jnp.tanh(c)
    return h @ wout_t + bout


if __name__ == "__main__":
    # Small shapes implied by the module: batch=2, seq=8, inputDim=32,
    # hiddenDim=32, outputDim=16.
    B, T, D, H, O = 2, 8, 32, 32, 16

    key = jax.random.PRNGKey(0)
    kx, k1, k2, k3, k4, k5 = jax.random.split(key, 6)

    scale = 1.0 / jnp.sqrt(jnp.float32(H))   # PyTorch LSTM init range
    x = jax.random.normal(kx, (B, T, D), jnp.float32)
    wih_t = jax.random.uniform(k1, (D, 4 * H), jnp.float32, -scale, scale)  # W_ih^T
    whh_t = jax.random.uniform(k2, (H, 4 * H), jnp.float32, -scale, scale)  # W_hh^T
    b = jax.random.uniform(k3, (1, 4 * H), jnp.float32, -scale, scale)      # b_ih + b_hh
    wout_t = jax.random.uniform(k4, (H, O), jnp.float32, -scale, scale)     # W_out^T
    bout = jax.random.uniform(k5, (1, O), jnp.float32, -scale, scale)       # b_out

    # One-time weight prep at "model init", then a lightweight per-call forward.
    forward = make_predictor(wih_t, whh_t, b, wout_t, bout)

    out = forward(x)
    out = jax.block_until_ready(out)

    ref = lstm_reference(x, wih_t, whh_t, b, wout_t, bout)
    assert out.shape == (B, O)
    assert jnp.allclose(out, ref, atol=1e-4, rtol=1e-4)

    print("KERNEL_OK")
</pallas_src>

<mosaic_0001>
module attributes {stable_mosaic.version = 11 : i64} {
  func.func @predictor_kernel(%arg0: memref<64x32xf32, #tpu.memory_space<vmem>>, %arg1: memref<112x128xf32, #tpu.memory_space<vmem>>, %arg2: memref<8x128xf32, #tpu.memory_space<vmem>>) attributes {dimension_semantics = [], scalar_prefetch = 0 : i64, scratch_operands = 0 : i64, tpu.core_type = #tpu.core_type<tc>} {
    %c0 = arith.constant 0 : index
    %c0_0 = arith.constant 0 : index
    %0 = vector.load %arg1[%c0, %c0_0] : memref<112x128xf32, #tpu.memory_space<vmem>>, vector<112x128xf32>
    %1 = vector.extract_strided_slice %0 {offsets = [0, 0], sizes = [32, 128], strides = [1, 1]} : vector<112x128xf32> to vector<32x128xf32>
    %2 = vector.extract_strided_slice %0 {offsets = [32, 0], sizes = [32, 128], strides = [1, 1]} : vector<112x128xf32> to vector<32x128xf32>
    %3 = vector.extract_strided_slice %0 {offsets = [64, 0], sizes = [1, 128], strides = [1, 1]} : vector<112x128xf32> to vector<1x128xf32>
    %4 = vector.extract_strided_slice %0 {offsets = [72, 0], sizes = [32, 128], strides = [1, 1]} : vector<112x128xf32> to vector<32x128xf32>
    %5 = vector.extract_strided_slice %0 {offsets = [104, 0], sizes = [1, 128], strides = [1, 1]} : vector<112x128xf32> to vector<1x128xf32>
    %c0_1 = arith.constant 0 : index
    %c0_2 = arith.constant 0 : index
    %6 = vector.load %arg0[%c0_1, %c0_2] : memref<64x32xf32, #tpu.memory_space<vmem>>, vector<64x32xf32>
    %cst = arith.constant dense<0.000000e+00> : vector<64x128xf32>
    %7 = tpu.matmul %6, %1, %cst {dimension_numbers = #tpu.dot_dimension_numbers<[1], [0], [0], [1], [0, 0, 1, 1], [], []>} : vector<64x32xf32>, vector<32x128xf32>, vector<64x128xf32> -> vector<64x128xf32>
    %8 = vector.broadcast %3 : vector<1x128xf32> to vector<64x128xf32>
    %9 = arith.addf %7, %8 : vector<64x128xf32>
    %cst_3 = arith.constant 0.000000e+00 : f32
    %10 = vector.broadcast %cst_3 : f32 to vector<8x32xf32>
    %cst_4 = arith.constant 0.000000e+00 : f32
    %11 = vector.broadcast %cst_4 : f32 to vector<8x32xf32>
    %12 = vector.extract_strided_slice %9 {offsets = [0, 0], sizes = [8, 128], strides = [1, 1]} : vector<64x128xf32> to vector<8x128xf32>
    %cst_5 = arith.constant dense<0.000000e+00> : vector<8x128xf32>
    %13 = tpu.matmul %10, %2, %cst_5 {dimension_numbers = #tpu.dot_dimension_numbers<[1], [0], [0], [1], [0, 0, 1, 1], [], []>} : vector<8x32xf32>, vector<32x128xf32>, vector<8x128xf32> -> vector<8x128xf32>
    %14 = arith.addf %12, %13 : vector<8x128xf32>
    %15 = arith.negf %14 : vector<8x128xf32>
    %16 = math.exp %15 : vector<8x128xf32>
    %cst_6 = arith.constant 1.000000e+00 : f32
    %17 = vector.broadcast %cst_6 : f32 to vector<8x128xf32>
    %18 = arith.addf %17, %16 : vector<8x128xf32>
    %19 = arith.divf %17, %18 : vector<8x128xf32>
    %20 = vector.extract_strided_slice %19 {offsets = [0, 0], sizes = [8, 32], strides = [1, 1]} : vector<8x128xf32> to vector<8x32xf32>
    %21 = vector.extract_strided_slice %19 {offsets = [0, 32], sizes = [8, 32], strides = [1, 1]} : vector<8x128xf32> to vector<8x32xf32>
    %22 = vector.extract_strided_slice %19 {offsets = [0, 64], sizes = [8, 32], strides = [1, 1]} : vector<8x128xf32> to vector<8x32xf32>
    %23 = vector.extract_strided_slice %19 {offsets = [0, 96], sizes = [8, 32], strides = [1, 1]} : vector<8x128xf32> to vector<8x32xf32>
    %cst_7 = arith.constant 2.000000e+00 : f32
    %24 = vector.broadcast %cst_7 : f32 to vector<8x32xf32>
    %25 = arith.mulf %24, %23 : vector<8x32xf32>
    %cst_8 = arith.constant 1.000000e+00 : f32
    %26 = vector.broadcast %cst_8 : f32 to vector<8x32xf32>
    %27 = arith.subf %25, %26 : vector<8x32xf32>
    %28 = arith.mulf %21, %11 : vector<8x32xf32>
    %29 = arith.mulf %20, %27 : vector<8x32xf32>
    %30 = arith.addf %28, %29 : vector<8x32xf32>
    %31 = math.tanh %30 : vector<8x32xf32>
    %32 = arith.mulf %22, %31 : vector<8x32xf32>
    %33 = vector.extract_strided_slice %9 {offsets = [8, 0], sizes = [8, 128], strides = [1, 1]} : vector<64x128xf32> to vector<8x128xf32>
    %cst_9 = arith.constant dense<0.000000e+00> : vector<8x128xf32>
    %34 = tpu.matmul %32, %2, %cst_9 {dimension_numbers = #tpu.dot_dimension_numbers<[1], [0], [0], [1], [0, 0, 1, 1], [], []>} : vector<8x32xf32>, vector<32x128xf32>, vector<8x128xf32> -> vector<8x128xf32>
    %35 = arith.addf %33, %34 : vector<8x128xf32>
    %36 = arith.negf %35 : vector<8x128xf32>
    %37 = math.exp %36 : vector<8x128xf32>
    %cst_10 = arith.constant 1.000000e+00 : f32
    %38 = vector.broadcast %cst_10 : f32 to vector<8x128xf32>
    %39 = arith.addf %38, %37 : vector<8x128xf32>
    %40 = arith.divf %38, %39 : vector<8x128xf32>
    %41 = vector.extract_strided_slice %40 {offsets = [0, 0], sizes = [8, 32], strides = [1, 1]} : vector<8x128xf32> to vector<8x32xf32>
    %42 = vector.extract_strided_slice %40 {offsets = [0, 32], sizes = [8, 32], strides = [1, 1]} : vector<8x128xf32> to vector<8x32xf32>
    %43 = vector.extract_strided_slice %40 {offsets = [0, 64], sizes = [8, 32], strides = [1, 1]} : vector<8x128xf32> to vector<8x32xf32>
    %44 = vector.extract_strided_slice %40 {offsets = [0, 96], sizes = [8, 32], strides = [1, 1]} : vector<8x128xf32> to vector<8x32xf32>
    %cst_11 = arith.constant 2.000000e+00 : f32
    %45 = vector.broadcast %cst_11 : f32 to vector<8x32xf32>
    %46 = arith.mulf %45, %44 : vector<8x32xf32>
    %cst_12 = arith.constant 1.000000e+00 : f32
    %47 = vector.broadcast %cst_12 : f32 to vector<8x32xf32>
    %48 = arith.subf %46, %47 : vector<8x32xf32>
    %49 = arith.mulf %42, %30 : vector<8x32xf32>
    %50 = arith.mulf %41, %48 : vector<8x32xf32>
    %51 = arith.addf %49, %50 : vector<8x32xf32>
    %52 = math.tanh %51 : vector<8x32xf32>
    %53 = arith.mulf %43, %52 : vector<8x32xf32>
    %54 = vector.extract_strided_slice %9 {offsets = [16, 0], sizes = [8, 128], strides = [1, 1]} : vector<64x128xf32> to vector<8x128xf32>
    %cst_13 = arith.constant dense<0.000000e+00> : vector<8x128xf32>
    %55 = tpu.matmul %53, %2, %cst_13 {dimension_numbers = #tpu.dot_dimension_numbers<[1], [0], [0], [1], [0, 0, 1, 1], [], []>} : vector<8x32xf32>, vector<32x128xf32>, vector<8x128xf32> -> vector<8x128xf32>
    %56 = arith.addf %54, %55 : vector<8x128xf32>
    %57 = arith.negf %56 : vector<8x128xf32>
    %58 = math.exp %57 : vector<8x128xf32>
    %cst_14 = arith.constant 1.000000e+00 : f32
    %59 = vector.broadcast %cst_14 : f32 to vector<8x128xf32>
    %60 = arith.addf %59, %58 : vector<8x128xf32>
    %61 = arith.divf %59, %60 : vector<8x128xf32>
    %62 = vector.extract_strided_slice %61 {offsets = [0, 0], sizes = [8, 32], strides = [1, 1]} : vector<8x128xf32> to vector<8x32xf32>
    %63 = vector.extract_strided_slice %61 {offsets = [0, 32], sizes = [8, 32], strides = [1, 1]} : vector<8x128xf32> to vector<8x32xf32>
    %64 = vector.extract_strided_slice %61 {offsets = [0, 64], sizes = [8, 32], strides = [1, 1]} : vector<8x128xf32> to vector<8x32xf32>
    %65 = vector.extract_strided_slice %61 {offsets = [0, 96], sizes = [8, 32], strides = [1, 1]} : vector<8x128xf32> to vector<8x32xf32>
    %cst_15 = arith.constant 2.000000e+00 : f32
    %66 = vector.broadcast %cst_15 : f32 to vector<8x32xf32>
    %67 = arith.mulf %66, %65 : vector<8x32xf32>
    %cst_16 = arith.constant 1.000000e+00 : f32
    %68 = vector.broadcast %cst_16 : f32 to vector<8x32xf32>
    %69 = arith.subf %67, %68 : vector<8x32xf32>
    %70 = arith.mulf %63, %51 : vector<8x32xf32>
    %71 = arith.mulf %62, %69 : vector<8x32xf32>
    %72 = arith.addf %70, %71 : vector<8x32xf32>
    %73 = math.tanh %72 : vector<8x32xf32>
    %74 = arith.mulf %64, %73 : vector<8x32xf32>
    %75 = vector.extract_strided_slice %9 {offsets = [24, 0], sizes = [8, 128], strides = [1, 1]} : vector<64x128xf32> to vector<8x128xf32>
    %cst_17 = arith.constant dense<0.000000e+00> : vector<8x128xf32>
    %76 = tpu.matmul %74, %2, %cst_17 {dimension_numbers = #tpu.dot_dimension_numbers<[1], [0], [0], [1], [0, 0, 1, 1], [], []>} : vector<8x32xf32>, vector<32x128xf32>, vector<8x128xf32> -> vector<8x128xf32>
    %77 = arith.addf %75, %76 : vector<8x128xf32>
    %78 = arith.negf %77 : vector<8x128xf32>
    %79 = math.exp %78 : vector<8x128xf32>
    %cst_18 = arith.constant 1.000000e+00 : f32
    %80 = vector.broadcast %cst_18 : f32 to vector<8x128xf32>
    %81 = arith.addf %80, %79 : vector<8x128xf32>
    %82 = arith.divf %80, %81 : vector<8x128xf32>
    %83 = vector.extract_strided_slice %82 {offsets = [0, 0], sizes = [8, 32], strides = [1, 1]} : vector<8x128xf32> to vector<8x32xf32>
    %84 = vector.extract_strided_slice %82 {offsets = [0, 32], sizes = [8, 32], strides = [1, 1]} : vector<8x128xf32> to vector<8x32xf32>
    %85 = vector.extract_strided_slice %82 {offsets = [0, 64], sizes = [8, 32], strides = [1, 1]} : vector<8x128xf32> to vector<8x32xf32>
    %86 = vector.extract_strided_slice %82 {offsets = [0, 96], sizes = [8, 32], strides = [1, 1]} : vector<8x128xf32> to vector<8x32xf32>
    %cst_19 = arith.constant 2.000000e+00 : f32
    %87 = vector.broadcast %cst_19 : f32 to vector<8x32xf32>
    %88 = arith.mulf %87, %86 : vector<8x32xf32>
    %cst_20 = arith.constant 1.000000e+00 : f32
    %89 = vector.broadcast %cst_20 : f32 to vector<8x32xf32>
    %90 = arith.subf %88, %89 : vector<8x32xf32>
    %91 = arith.mulf %84, %72 : vector<8x32xf32>
    %92 = arith.mulf %83, %90 : vector<8x32xf32>
    %93 = arith.addf %91, %92 : vector<8x32xf32>
    %94 = math.tanh %93 : vector<8x32xf32>
    %95 = arith.mulf %85, %94 : vector<8x32xf32>
    %96 = vector.extract_strided_slice %9 {offsets = [32, 0], sizes = [8, 128], strides = [1, 1]} : vector<64x128xf32> to vector<8x128xf32>
    %cst_21 = arith.constant dense<0.000000e+00> : vector<8x128xf32>
    %97 = tpu.matmul %95, %2, %cst_21 {dimension_numbers = #tpu.dot_dimension_numbers<[1], [0], [0], [1], [0, 0, 1, 1], [], []>} : vector<8x32xf32>, vector<32x128xf32>, vector<8x128xf32> -> vector<8x128xf32>
    %98 = arith.addf %96, %97 : vector<8x128xf32>
    %99 = arith.negf %98 : vector<8x128xf32>
    %100 = math.exp %99 : vector<8x128xf32>
    %cst_22 = arith.constant 1.000000e+00 : f32
    %101 = vector.broadcast %cst_22 : f32 to vector<8x128xf32>
    %102 = arith.addf %101, %100 : vector<8x128xf32>
    %103 = arith.divf %101, %102 : vector<8x128xf32>
    %104 = vector.extract_strided_slice %103 {offsets = [0, 0], sizes = [8, 32], strides = [1, 1]} : vector<8x128xf32> to vector<8x32xf32>
    %105 = vector.extract_strided_slice %103 {offsets = [0, 32], sizes = [8, 32], strides = [1, 1]} : vector<8x128xf32> to vector<8x32xf32>
    %106 = vector.extract_strided_slice %103 {offsets = [0, 64], sizes = [8, 32], strides = [1, 1]} : vector<8x128xf32> to vector<8x32xf32>
    %107 = vector.extract_strided_slice %103 {offsets = [0, 96], sizes = [8, 32], strides = [1, 1]} : vector<8x128xf32> to vector<8x32xf32>
    %cst_23 = arith.constant 2.000000e+00 : f32
    %108 = vector.broadcast %cst_23 : f32 to vector<8x32xf32>
    %109 = arith.mulf %108, %107 : vector<8x32xf32>
    %cst_24 = arith.constant 1.000000e+00 : f32
    %110 = vector.broadcast %cst_24 : f32 to vector<8x32xf32>
    %111 = arith.subf %109, %110 : vector<8x32xf32>
    %112 = arith.mulf %105, %93 : vector<8x32xf32>
    %113 = arith.mulf %104, %111 : vector<8x32xf32>
    %114 = arith.addf %112, %113 : vector<8x32xf32>
    %115 = math.tanh %114 : vector<8x32xf32>
    %116 = arith.mulf %106, %115 : vector<8x32xf32>
    %117 = vector.extract_strided_slice %9 {offsets = [40, 0], sizes = [8, 128], strides = [1, 1]} : vector<64x128xf32> to vector<8x128xf32>
    %cst_25 = arith.constant dense<0.000000e+00> : vector<8x128xf32>
    %118 = tpu.matmul %116, %2, %cst_25 {dimension_numbers = #tpu.dot_dimension_numbers<[1], [0], [0], [1], [0, 0, 1, 1], [], []>} : vector<8x32xf32>, vector<32x128xf32>, vector<8x128xf32> -> vector<8x128xf32>
    %119 = arith.addf %117, %118 : vector<8x128xf32>
    %120 = arith.negf %119 : vector<8x128xf32>
    %121 = math.exp %120 : vector<8x128xf32>
    %cst_26 = arith.constant 1.000000e+00 : f32
    %122 = vector.broadcast %cst_26 : f32 to vector<8x128xf32>
    %123 = arith.addf %122, %121 : vector<8x128xf32>
    %124 = arith.divf %122, %123 : vector<8x128xf32>
    %125 = vector.extract_strided_slice %124 {offsets = [0, 0], sizes = [8, 32], strides = [1, 1]} : vector<8x128xf32> to vector<8x32xf32>
    %126 = vector.extract_strided_slice %124 {offsets = [0, 32], sizes = [8, 32], strides = [1, 1]} : vector<8x128xf32> to vector<8x32xf32>
    %127 = vector.extract_strided_slice %124 {offsets = [0, 64], sizes = [8, 32], strides = [1, 1]} : vector<8x128xf32> to vector<8x32xf32>
    %128 = vector.extract_strided_slice %124 {offsets = [0, 96], sizes = [8, 32], strides = [1, 1]} : vector<8x128xf32> to vector<8x32xf32>
    %cst_27 = arith.constant 2.000000e+00 : f32
    %129 = vector.broadcast %cst_27 : f32 to vector<8x32xf32>
    %130 = arith.mulf %129, %128 : vector<8x32xf32>
    %cst_28 = arith.constant 1.000000e+00 : f32
    %131 = vector.broadcast %cst_28 : f32 to vector<8x32xf32>
    %132 = arith.subf %130, %131 : vector<8x32xf32>
    %133 = arith.mulf %126, %114 : vector<8x32xf32>
    %134 = arith.mulf %125, %132 : vector<8x32xf32>
    %135 = arith.addf %133, %134 : vector<8x32xf32>
    %136 = math.tanh %135 : vector<8x32xf32>
    %137 = arith.mulf %127, %136 : vector<8x32xf32>
    %138 = vector.extract_strided_slice %9 {offsets = [48, 0], sizes = [8, 128], strides = [1, 1]} : vector<64x128xf32> to vector<8x128xf32>
    %cst_29 = arith.constant dense<0.000000e+00> : vector<8x128xf32>
    %139 = tpu.matmul %137, %2, %cst_29 {dimension_numbers = #tpu.dot_dimension_numbers<[1], [0], [0], [1], [0, 0, 1, 1], [], []>} : vector<8x32xf32>, vector<32x128xf32>, vector<8x128xf32> -> vector<8x128xf32>
    %140 = arith.addf %138, %139 : vector<8x128xf32>
    %141 = arith.negf %140 : vector<8x128xf32>
    %142 = math.exp %141 : vector<8x128xf32>
    %cst_30 = arith.constant 1.000000e+00 : f32
    %143 = vector.broadcast %cst_30 : f32 to vector<8x128xf32>
    %144 = arith.addf %143, %142 : vector<8x128xf32>
    %145 = arith.divf %143, %144 : vector<8x128xf32>
    %146 = vector.extract_strided_slice %145 {offsets = [0, 0], sizes = [8, 32], strides = [1, 1]} : vector<8x128xf32> to vector<8x32xf32>
    %147 = vector.extract_strided_slice %145 {offsets = [0, 32], sizes = [8, 32], strides = [1, 1]} : vector<8x128xf32> to vector<8x32xf32>
    %148 = vector.extract_strided_slice %145 {offsets = [0, 64], sizes = [8, 32], strides = [1, 1]} : vector<8x128xf32> to vector<8x32xf32>
    %149 = vector.extract_strided_slice %145 {offsets = [0, 96], sizes = [8, 32], strides = [1, 1]} : vector<8x128xf32> to vector<8x32xf32>
    %cst_31 = arith.constant 2.000000e+00 : f32
    %150 = vector.broadcast %cst_31 : f32 to vector<8x32xf32>
    %151 = arith.mulf %150, %149 : vector<8x32xf32>
    %cst_32 = arith.constant 1.000000e+00 : f32
    %152 = vector.broadcast %cst_32 : f32 to vector<8x32xf32>
    %153 = arith.subf %151, %152 : vector<8x32xf32>
    %154 = arith.mulf %147, %135 : vector<8x32xf32>
    %155 = arith.mulf %146, %153 : vector<8x32xf32>
    %156 = arith.addf %154, %155 : vector<8x32xf32>
    %157 = math.tanh %156 : vector<8x32xf32>
    %158 = arith.mulf %148, %157 : vector<8x32xf32>
    %159 = vector.extract_strided_slice %9 {offsets = [56, 0], sizes = [8, 128], strides = [1, 1]} : vector<64x128xf32> to vector<8x128xf32>
    %cst_33 = arith.constant dense<0.000000e+00> : vector<8x128xf32>
    %160 = tpu.matmul %158, %2, %cst_33 {dimension_numbers = #tpu.dot_dimension_numbers<[1], [0], [0], [1], [0, 0, 1, 1], [], []>} : vector<8x32xf32>, vector<32x128xf32>, vector<8x128xf32> -> vector<8x128xf32>
    %161 = arith.addf %159, %160 : vector<8x128xf32>
    %162 = arith.negf %161 : vector<8x128xf32>
    %163 = math.exp %162 : vector<8x128xf32>
    %cst_34 = arith.constant 1.000000e+00 : f32
    %164 = vector.broadcast %cst_34 : f32 to vector<8x128xf32>
    %165 = arith.addf %164, %163 : vector<8x128xf32>
    %166 = arith.divf %164, %165 : vector<8x128xf32>
    %167 = vector.extract_strided_slice %166 {offsets = [0, 0], sizes = [8, 32], strides = [1, 1]} : vector<8x128xf32> to vector<8x32xf32>
    %168 = vector.extract_strided_slice %166 {offsets = [0, 32], sizes = [8, 32], strides = [1, 1]} : vector<8x128xf32> to vector<8x32xf32>
    %169 = vector.extract_strided_slice %166 {offsets = [0, 64], sizes = [8, 32], strides = [1, 1]} : vector<8x128xf32> to vector<8x32xf32>
    %170 = vector.extract_strided_slice %166 {offsets = [0, 96], sizes = [8, 32], strides = [1, 1]} : vector<8x128xf32> to vector<8x32xf32>
    %cst_35 = arith.constant 2.000000e+00 : f32
    %171 = vector.broadcast %cst_35 : f32 to vector<8x32xf32>
    %172 = arith.mulf %171, %170 : vector<8x32xf32>
    %cst_36 = arith.constant 1.000000e+00 : f32
    %173 = vector.broadcast %cst_36 : f32 to vector<8x32xf32>
    %174 = arith.subf %172, %173 : vector<8x32xf32>
    %175 = arith.mulf %168, %156 : vector<8x32xf32>
    %176 = arith.mulf %167, %174 : vector<8x32xf32>
    %177 = arith.addf %175, %176 : vector<8x32xf32>
    %178 = math.tanh %177 : vector<8x32xf32>
    %179 = arith.mulf %169, %178 : vector<8x32xf32>
    %cst_37 = arith.constant dense<0.000000e+00> : vector<8x128xf32>
    %180 = tpu.matmul %179, %4, %cst_37 {dimension_numbers = #tpu.dot_dimension_numbers<[1], [0], [0], [1], [0, 0, 1, 1], [], []>} : vector<8x32xf32>, vector<32x128xf32>, vector<8x128xf32> -> vector<8x128xf32>
    %181 = vector.broadcast %5 : vector<1x128xf32> to vector<8x128xf32>
    %182 = arith.addf %180, %181 : vector<8x128xf32>
    %c0_38 = arith.constant 0 : index
    %c0_39 = arith.constant 0 : index
    %183 = vector.load %arg2[%c0_38, %c0_39] : memref<8x128xf32, #tpu.memory_space<vmem>>, vector<8x128xf32>
    tpu.vector_store %arg2[%c0_38, %c0_39], %182 {strides = array<i32>} : memref<8x128xf32, #tpu.memory_space<vmem>>, vector<8x128xf32>,
    return
  }
}

</mosaic_0001>

<llo_original>
// kernel: forward.1
$region0: #{forward.1}
  #allocation0 [shape = 'u32[]', space=smem, size = 0x4, offset = 0x4, fixed_abs, tag = 'smem constant byte address 0x4 - core index']
  #allocation1 [shape = 'u32[144,128]{1,0:T(1,128)}', space=vmem, size = 0x12000, scoped, tag = 'internal scratch']
  %s0 = inlined_call_operand.vmem [shape: f32[64,32], index: 0, kind: input, shape index: {}]
  %s1 = inlined_call_operand.vmem [shape: f32[112,128], index: 1, kind: input, shape index: {}]
  %s2 = inlined_call_operand.vmem [shape: f32[8,128], index: 2, kind: output, shape index: {}]
  %s3 = sld [smem:[#allocation0]]
  $region18: #{forward.1} parent=0
    _
  %s5 = ssub.s32 1, %s3
  %s6 = scalar_select 0, %s5, %s3
  // Predicated region
  $region2: #{forward.1} parent=0 // pred_check
    _
  $region3: #{forward.1} parent=0 // pred_check_branch
    %8 = sbr.rel (0) target = $region5
  $region4: #{forward.1} parent=0 // pred_region
    _
  $region5: #{forward.1} parent=0 // pred_fallthru
    _
  // Predicated region
  $region6: #{forward.1} parent=0 // pred_check
    _
  $region7: #{forward.1} parent=0 // pred_check_branch
    %10 = sbr.rel (0) target = $region9
  $region8: #{forward.1} parent=0 // pred_region
    _
  $region9: #{forward.1} parent=0 // pred_fallthru
    _
  %v11 = vld [vmem:[%s1] sm:$0xff]
  %v12 = vld [vmem:[%s1 + $0x8] sm:$0xff]
  %v13 = vld [vmem:[%s1 + $0x10] sm:$0xff]
  %v14 = vld [vmem:[%s1 + $0x18] sm:$0xff]
  %v15 = vld [vmem:[%s1 + $0x20] sm:$0xff]
  %v16 = vld [vmem:[%s1 + $0x28] sm:$0xff]
  %v17 = vld [vmem:[%s1 + $0x30] sm:$0xff]
  %v18 = vld [vmem:[%s1 + $0x38] sm:$0xff]
  %v19 = vld [vmem:[%s1 + $0x40] sm:$0xff]
  %v20 = vld [vmem:[%s1 + $0x48] sm:$0xff]
  %v21 = vld [vmem:[%s1 + $0x50] sm:$0xff]
  %v22 = vld [vmem:[%s1 + $0x58] sm:$0xff]
  %v23 = vld [vmem:[%s1 + $0x60] sm:$0xff]
  %v24 = vld [vmem:[%s1 + $0x68] sm:$0xff]
  %v25 = vld [vmem:[%s0] sm:$0xff]
  %v26 = vld [vmem:[%s0 + $0x8] sm:$0xff]
  %v27 = vld [vmem:[%s0 + $0x10] sm:$0xff]
  %v28 = vld [vmem:[%s0 + $0x18] sm:$0xff]
  %v29 = vld [vmem:[%s0 + $0x20] sm:$0xff]
  %v30 = vld [vmem:[%s0 + $0x28] sm:$0xff]
  %v31 = vld [vmem:[%s0 + $0x30] sm:$0xff]
  %v32 = vld [vmem:[%s0 + $0x38] sm:$0xff]
  %v33 = vlaneseq
  %v34 = vshrl.u32 %v33, 7
  %v35 = vsub.s32 0, %v34
  %v36 = vrot.slane %v19, %v35
  %vm37 = vcmask 261120
  %v39 = vsel %vm37, %v25, 0
  %v42 = vsel %vm37, %v26, 0
  %v45 = vsel %vm37, %v27, 0
  %v48 = vsel %vm37, %v28, 0
  %v51 = vsel %vm37, %v29, 0
  %v54 = vsel %vm37, %v30, 0
  %v57 = vsel %vm37, %v31, 0
  %v60 = vsel %vm37, %v32, 0
  %62 = vmatprep.subr.mxu0 0.0
  %63 = vmatpush1.msra.mxu0 %v11
  %64 = vmatprep.subr.mxu0 0.0
  %65 = vmatpush1.msra.mxu0 %v12
  %66 = vmatprep.subr.mxu0 0.0
  %67 = vmatpush1.msra.mxu0 %v13
  %68 = vmatprep.subr.mxu0 0.0
  %69 = vmatpush1.msra.mxu0 %v14
  %70 = vmatprep.subr.mxu0 0.0
  %71 = vmatpush1.msra.mxu0 0.0
  %72 = vmatprep.subr.mxu0 0.0
  %73 = vmatpush1.msra.mxu0 0.0
  %74 = vmatprep.subr.mxu0 0.0
  %75 = vmatpush1.msra.mxu0 0.0
  %76 = vmatprep.subr.mxu0 0.0
  %77 = vmatpush1.msra.mxu0 0.0
  %78 = vmatprep.subr.mxu0 0.0
  %79 = vmatpush1.msra.mxu0 0.0
  %80 = vmatprep.subr.mxu0 0.0
  %81 = vmatpush1.msra.mxu0 0.0
  %82 = vmatprep.subr.mxu0 0.0
  %83 = vmatpush1.msra.mxu0 0.0
  %84 = vmatprep.subr.mxu0 0.0
  %85 = vmatpush1.msra.mxu0 0.0
  %86 = vmatprep.subr.mxu0 0.0
  %87 = vmatpush1.msra.mxu0 0.0
  %88 = vmatprep.subr.mxu0 0.0
  %89 = vmatpush1.msra.mxu0 0.0
  %90 = vmatprep.subr.mxu0 0.0
  %91 = vmatpush1.msra.mxu0 0.0
  %92 = vmatprep.subr.mxu0 0.0
  %93 = vmatpush1.msra.mxu0 0.0
  %94 = vmatprep.subr.mxu0 0.0
  %95 = vmatpush1.msra.mxu0 0.0
  %96 = vmatprep.subr.mxu0 0.0
  %97 = vmatpush1.msra.mxu0 0.0
  %98 = vmatprep.subr.mxu0 0.0
  %99 = vmatpush1.msra.mxu0 0.0
  %100 = vmatprep.subr.mxu0 0.0
  %101 = vmatpush1.msra.mxu0 0.0
  %102 = vmatprep.subr.mxu0 0.0
  %103 = vmatpush1.msra.mxu0 0.0
  %104 = vmatprep.subr.mxu0 0.0
  %105 = vmatpush1.msra.mxu0 0.0
  %106 = vmatprep.subr.mxu0 0.0
  %107 = vmatpush1.msra.mxu0 0.0
  %108 = vmatprep.subr.mxu0 0.0
  %109 = vmatpush1.msra.mxu0 0.0
  %110 = vmatprep.subr.mxu0 0.0
  %111 = vmatpush1.msra.mxu0 0.0
  %112 = vmatprep.subr.mxu0 0.0
  %113 = vmatpush1.msra.mxu0 0.0
  %114 = vmatprep.subr.mxu0 0.0
  %115 = vmatpush1.msra.mxu0 0.0
  %116 = vmatprep.subr.mxu0 0.0
  %117 = vmatpush1.msra.mxu0 0.0
  %118 = vmatprep.subr.mxu0 0.0
  %119 = vmatpush1.msra.mxu0 0.0
  %120 = vmatprep.subr.mxu0 0.0
  %121 = vmatpush1.msra.mxu0 0.0
  %122 = vmatprep.subr.mxu0 0.0
  %123 = vmatpush1.msra.mxu0 0.0
  %124 = vmatprep.subr.mxu0 0.0
  %125 = vmatpush1.msra.mxu0 0.0
  %126 = vmatprep.mubr.f32.mxu0 0.0
  %127 = vmatmul.mubr.f32.gmra.mrb[0].mxu0 %v39
  %v128 = vpop.f32.mrb[0].mxu0
  %v129 = vadd.f32 %v36, %v128
  %v130 = vpop.f32.mrb[0].mxu0
  %131 = vmatprep.mubr.f32.mxu0 0.0
  %132 = vmatmul.mubr.f32.gmra.mrb[0].mxu0 %v42
  %v133 = vpop.f32.mrb[0].mxu0
  %v134 = vadd.f32 %v36, %v133
  %v135 = vpop.f32.mrb[0].mxu0
  %136 = vmatprep.mubr.f32.mxu0 0.0
  %137 = vmatmul.mubr.f32.gmra.mrb[0].mxu0 %v45
  %v138 = vpop.f32.mrb[0].mxu0
  %v139 = vadd.f32 %v36, %v138
  %v140 = vpop.f32.mrb[0].mxu0
  %141 = vmatprep.mubr.f32.mxu0 0.0
  %142 = vmatmul.mubr.f32.gmra.mrb[0].mxu0 %v48
  %v143 = vpop.f32.mrb[0].mxu0
  %v144 = vadd.f32 %v36, %v143
  %v145 = vpop.f32.mrb[0].mxu0
  %146 = vmatprep.mubr.f32.mxu0 0.0
  %147 = vmatmul.mubr.f32.gmra.mrb[0].mxu0 %v51
  %v148 = vpop.f32.mrb[0].mxu0
  %v149 = vadd.f32 %v36, %v148
  %v150 = vpop.f32.mrb[0].mxu0
  %151 = vmatprep.mubr.f32.mxu0 0.0
  %152 = vmatmul.mubr.f32.gmra.mrb[0].mxu0 %v54
  %v153 = vpop.f32.mrb[0].mxu0
  %v154 = vadd.f32 %v36, %v153
  %v155 = vpop.f32.mrb[0].mxu0
  %156 = vmatprep.mubr.f32.mxu0 0.0
  %157 = vmatmul.mubr.f32.gmra.mrb[0].mxu0 %v57
  %v158 = vpop.f32.mrb[0].mxu0
  %v159 = vadd.f32 %v36, %v158
  %v160 = vpop.f32.mrb[0].mxu0
  %161 = vmatprep.mubr.f32.mxu0 0.0
  %162 = vmatmul.mubr.f32.gmra.mrb[0].mxu0 %v60
  %v163 = vpop.f32.mrb[0].mxu0
  %v164 = vadd.f32 %v36, %v163
  %v165 = vpop.f32.mrb[0].mxu0
  %166 = vdwg.mxu0
  %v168 = vsel %vm37, 0.0, 0
  %170 = vmatprep.subr.mxu0 0.0
  %171 = vmatpush1.msra.mxu0 %v15
  %172 = vmatprep.subr.mxu0 0.0
  %173 = vmatpush1.msra.mxu0 %v16
  %174 = vmatprep.subr.mxu0 0.0
  %175 = vmatpush1.msra.mxu0 %v17
  %176 = vmatprep.subr.mxu0 0.0
  %177 = vmatpush1.msra.mxu0 %v18
  %178 = vmatprep.subr.mxu0 0.0
  %179 = vmatpush1.msra.mxu0 0.0
  %180 = vmatprep.subr.mxu0 0.0
  %181 = vmatpush1.msra.mxu0 0.0
  %182 = vmatprep.subr.mxu0 0.0
  %183 = vmatpush1.msra.mxu0 0.0
  %184 = vmatprep.subr.mxu0 0.0
  %185 = vmatpush1.msra.mxu0 0.0
  %186 = vmatprep.subr.mxu0 0.0
  %187 = vmatpush1.msra.mxu0 0.0
  %188 = vmatprep.subr.mxu0 0.0
  %189 = vmatpush1.msra.mxu0 0.0
  %190 = vmatprep.subr.mxu0 0.0
  %191 = vmatpush1.msra.mxu0 0.0
  %192 = vmatprep.subr.mxu0 0.0
  %193 = vmatpush1.msra.mxu0 0.0
  %194 = vmatprep.subr.mxu0 0.0
  %195 = vmatpush1.msra.mxu0 0.0
  %196 = vmatprep.subr.mxu0 0.0
  %197 = vmatpush1.msra.mxu0 0.0
  %198 = vmatprep.subr.mxu0 0.0
  %199 = vmatpush1.msra.mxu0 0.0
  %200 = vmatprep.subr.mxu0 0.0
  %201 = vmatpush1.msra.mxu0 0.0
  %202 = vmatprep.subr.mxu0 0.0
  %203 = vmatpush1.msra.mxu0 0.0
  %204 = vmatprep.subr.mxu0 0.0
  %205 = vmatpush1.msra.mxu0 0.0
  %206 = vmatprep.subr.mxu0 0.0
  %207 = vmatpush1.msra.mxu0 0.0
  %208 = vmatprep.subr.mxu0 0.0
  %209 = vmatpush1.msra.mxu0 0.0
  %210 = vmatprep.subr.mxu0 0.0
  %211 = vmatpush1.msra.mxu0 0.0
  %212 = vmatprep.subr.mxu0 0.0
  %213 = vmatpush1.msra.mxu0 0.0
  %214 = vmatprep.subr.mxu0 0.0
  %215 = vmatpush1.msra.mxu0 0.0
  %216 = vmatprep.subr.mxu0 0.0
  %217 = vmatpush1.msra.mxu0 0.0
  %218 = vmatprep.subr.mxu0 0.0
  %219 = vmatpush1.msra.mxu0 0.0
  %220 = vmatprep.subr.mxu0 0.0
  %221 = vmatpush1.msra.mxu0 0.0
  %222 = vmatprep.subr.mxu0 0.0
  %223 = vmatpush1.msra.mxu0 0.0
  %224 = vmatprep.subr.mxu0 0.0
  %225 = vmatpush1.msra.mxu0 0.0
  %226 = vmatprep.subr.mxu0 0.0
  %227 = vmatpush1.msra.mxu0 0.0
  %228 = vmatprep.subr.mxu0 0.0
  %229 = vmatpush1.msra.mxu0 0.0
  %230 = vmatprep.subr.mxu0 0.0
  %231 = vmatpush1.msra.mxu0 0.0
  %232 = vmatprep.subr.mxu0 0.0
  %233 = vmatpush1.msra.mxu0 0.0
  %234 = vmatprep.mubr.f32.mxu0 0.0
  %235 = vmatmul.mubr.f32.gmra.mrb[0].mxu0 %v168
  %v236 = vpop.f32.mrb[0].mxu0
  %v237 = vadd.f32 0.0, %v236
  %v238 = vpop.f32.mrb[0].mxu0
  %239 = vdwg.mxu0
  %v240 = vadd.f32 %v129, %v237
  %v241 = vxor.u32 %v240, 2147483648
  %v242 = vmul.f32 %v241, 1.442695
  %v243 = vpow.pop %v242
  %v244 = vadd.f32 %v243, 1.0
  %v245 = vrcp.pop %v244
  %v246 = vmul.f32 1.0, %v245
  %v247 = vmul.f32 %v246, 2.0
  %v248 = vsub.f32 %v247, 1.0
  %v249 = vmul.f32 %v246, 0.0
  %251 = vrot.lane.b32.xlu0 %v248, 32
  %v252 = vpop.permute.xlu0 %251
  %v254 = vmul.f32 %v246, %v252
  %256 = vrot.lane.b32.xlu0 %v254, 32
  %v257 = vpop.permute.xlu0 %256
  %v259 = vadd.f32 %v249, %v257
  %v260 = vtanh.pop %v259
  %262 = vrot.lane.b32.xlu0 %v260, 32
  %v263 = vpop.permute.xlu0 %262
  %v265 = vmul.f32 %v246, %v263
  %267 = vrot.lane.b32.xlu0 %v265, 64
  %v268 = vpop.permute.xlu0 %267
  %v269 = vsel %vm37, %v268, 0
  %271 = vmatprep.subr.mxu0 0.0
  %272 = vmatpush1.msra.mxu0 %v15
  %273 = vmatprep.subr.mxu0 0.0
  %274 = vmatpush1.msra.mxu0 %v16
  %275 = vmatprep.subr.mxu0 0.0
  %276 = vmatpush1.msra.mxu0 %v17
  %277 = vmatprep.subr.mxu0 0.0
  %278 = vmatpush1.msra.mxu0 %v18
  %279 = vmatprep.subr.mxu0 0.0
  %280 = vmatpush1.msra.mxu0 0.0
  %281 = vmatprep.subr.mxu0 0.0
  %282 = vmatpush1.msra.mxu0 0.0
  %283 = vmatprep.subr.mxu0 0.0
  %284 = vmatpush1.msra.mxu0 0.0
  %285 = vmatprep.subr.mxu0 0.0
  %286 = vmatpush1.msra.mxu0 0.0
  %287 = vmatprep.subr.mxu0 0.0
  %288 = vmatpush1.msra.mxu0 0.0
  %289 = vmatprep.subr.mxu0 0.0
  %290 = vmatpush1.msra.mxu0 0.0
  %291 = vmatprep.subr.mxu0 0.0
  %292 = vmatpush1.msra.mxu0 0.0
  %293 = vmatprep.subr.mxu0 0.0
  %294 = vmatpush1.msra.mxu0 0.0
  %295 = vmatprep.subr.mxu0 0.0
  %296 = vmatpush1.msra.mxu0 0.0
  %297 = vmatprep.subr.mxu0 0.0
  %298 = vmatpush1.msra.mxu0 0.0
  %299 = vmatprep.subr.mxu0 0.0
  %300 = vmatpush1.msra.mxu0 0.0
  %301 = vmatprep.subr.mxu0 0.0
  %302 = vmatpush1.msra.mxu0 0.0
  %303 = vmatprep.subr.mxu0 0.0
  %304 = vmatpush1.msra.mxu0 0.0
  %305 = vmatprep.subr.mxu0 0.0
  %306 = vmatpush1.msra.mxu0 0.0
  %307 = vmatprep.subr.mxu0 0.0
  %308 = vmatpush1.msra.mxu0 0.0
  %309 = vmatprep.subr.mxu0 0.0
  %310 = vmatpush1.msra.mxu0 0.0
  %311 = vmatprep.subr.mxu0 0.0
  %312 = vmatpush1.msra.mxu0 0.0
  %313 = vmatprep.subr.mxu0 0.0
  %314 = vmatpush1.msra.mxu0 0.0
  %315 = vmatprep.subr.mxu0 0.0
  %316 = vmatpush1.msra.mxu0 0.0
  %317 = vmatprep.subr.mxu0 0.0
  %318 = vmatpush1.msra.mxu0 0.0
  %319 = vmatprep.subr.mxu0 0.0
  %320 = vmatpush1.msra.mxu0 0.0
  %321 = vmatprep.subr.mxu0 0.0
  %322 = vmatpush1.msra.mxu0 0.0
  %323 = vmatprep.subr.mxu0 0.0
  %324 = vmatpush1.msra.mxu0 0.0
  %325 = vmatprep.subr.mxu0 0.0
  %326 = vmatpush1.msra.mxu0 0.0
  %327 = vmatprep.subr.mxu0 0.0
  %328 = vmatpush1.msra.mxu0 0.0
  %329 = vmatprep.subr.mxu0 0.0
  %330 = vmatpush1.msra.mxu0 0.0
  %331 = vmatprep.subr.mxu0 0.0
  %332 = vmatpush1.msra.mxu0 0.0
  %333 = vmatprep.subr.mxu0 0.0
  %334 = vmatpush1.msra.mxu0 0.0
  %335 = vmatprep.mubr.f32.mxu0 0.0
  %336 = vmatmul.mubr.f32.gmra.mrb[0].mxu0 %v269
  %v337 = vpop.f32.mrb[0].mxu0
  %v338 = vadd.f32 0.0, %v337
  %v339 = vpop.f32.mrb[0].mxu0
  %340 = vdwg.mxu0
  %v341 = vadd.f32 %v134, %v338
  %v342 = vxor.u32 %v341, 2147483648
  %v343 = vmul.f32 %v342, 1.442695
  %v344 = vpow.pop %v343
  %v345 = vadd.f32 %v344, 1.0
  %v346 = vrcp.pop %v345
  %v347 = vmul.f32 1.0, %v346
  %v348 = vmul.f32 %v347, 2.0
  %v349 = vsub.f32 %v348, 1.0
  %v350 = vmul.f32 %v347, %v259
  %352 = vrot.lane.b32.xlu0 %v349, 32
  %v353 = vpop.permute.xlu0 %352
  %v355 = vmul.f32 %v347, %v353
  %357 = vrot.lane.b32.xlu0 %v355, 32
  %v358 = vpop.permute.xlu0 %357
  %v360 = vadd.f32 %v350, %v358
  %v361 = vtanh.pop %v360
  %363 = vrot.lane.b32.xlu0 %v361, 32
  %v364 = vpop.permute.xlu0 %363
  %v366 = vmul.f32 %v347, %v364
  %368 = vrot.lane.b32.xlu0 %v366, 64
  %v369 = vpop.permute.xlu0 %368
  %v370 = vsel %vm37, %v369, 0
  %372 = vmatprep.subr.mxu0 0.0
  %373 = vmatpush1.msra.mxu0 %v15
  %374 = vmatprep.subr.mxu0 0.0
  %375 = vmatpush1.msra.mxu0 %v16
  %376 = vmatprep.subr.mxu0 0.0
  %377 = vmatpush1.msra.mxu0 %v17
  %378 = vmatprep.subr.mxu0 0.0
  %379 = vmatpush1.msra.mxu0 %v18
  %380 = vmatprep.subr.mxu0 0.0
  %381 = vmatpush1.msra.mxu0 0.0
  %382 = vmatprep.subr.mxu0 0.0
  %383 = vmatpush1.msra.mxu0 0.0
  %384 = vmatprep.subr.mxu0 0.0
  %385 = vmatpush1.msra.mxu0 0.0
  %386 = vmatprep.subr.mxu0 0.0
  %387 = vmatpush1.msra.mxu0 0.0
  %388 = vmatprep.subr.mxu0 0.0
  %389 = vmatpush1.msra.mxu0 0.0
  %390 = vmatprep.subr.mxu0 0.0
  %391 = vmatpush1.msra.mxu0 0.0
  %392 = vmatprep.subr.mxu0 0.0
  %393 = vmatpush1.msra.mxu0 0.0
  %394 = vmatprep.subr.mxu0 0.0
  %395 = vmatpush1.msra.mxu0 0.0
  %396 = vmatprep.subr.mxu0 0.0
  %397 = vmatpush1.msra.mxu0 0.0
  %398 = vmatprep.subr.mxu0 0.0
  %399 = vmatpush1.msra.mxu0 0.0
  %400 = vmatprep.subr.mxu0 0.0
  %401 = vmatpush1.msra.mxu0 0.0
  %402 = vmatprep.subr.mxu0 0.0
  %403 = vmatpush1.msra.mxu0 0.0
  %404 = vmatprep.subr.mxu0 0.0
  %405 = vmatpush1.msra.mxu0 0.0
  %406 = vmatprep.subr.mxu0 0.0
  %407 = vmatpush1.msra.mxu0 0.0
  %408 = vmatprep.subr.mxu0 0.0
  %409 = vmatpush1.msra.mxu0 0.0
  %410 = vmatprep.subr.mxu0 0.0
  %411 = vmatpush1.msra.mxu0 0.0
  %412 = vmatprep.subr.mxu0 0.0
  %413 = vmatpush1.msra.mxu0 0.0
  %414 = vmatprep.subr.mxu0 0.0
  %415 = vmatpush1.msra.mxu0 0.0
  %416 = vmatprep.subr.mxu0 0.0
  %417 = vmatpush1.msra.mxu0 0.0
  %418 = vmatprep.subr.mxu0 0.0
  %419 = vmatpush1.msra.mxu0 0.0
  %420 = vmatprep.subr.mxu0 0.0
  %421 = vmatpush1.msra.mxu0 0.0
  %422 = vmatprep.subr.mxu0 0.0
  %423 = vmatpush1.msra.mxu0 0.0
  %424 = vmatprep.subr.mxu0 0.0
  %425 = vmatpush1.msra.mxu0 0.0
  %426 = vmatprep.subr.mxu0 0.0
  %427 = vmatpush1.msra.mxu0 0.0
  %428 = vmatprep.subr.mxu0 0.0
  %429 = vmatpush1.msra.mxu0 0.0
  %430 = vmatprep.subr.mxu0 0.0
  %431 = vmatpush1.msra.mxu0 0.0
  %432 = vmatprep.subr.mxu0 0.0
  %433 = vmatpush1.msra.mxu0 0.0
  %434 = vmatprep.subr.mxu0 0.0
  %435 = vmatpush1.msra.mxu0 0.0
  %436 = vmatprep.mubr.f32.mxu0 0.0
  %437 = vmatmul.mubr.f32.gmra.mrb[0].mxu0 %v370
  %v438 = vpop.f32.mrb[0].mxu0
  %v439 = vadd.f32 0.0, %v438
  %v440 = vpop.f32.mrb[0].mxu0
  %441 = vdwg.mxu0
  %v442 = vadd.f32 %v139, %v439
  %v443 = vxor.u32 %v442, 2147483648
  %v444 = vmul.f32 %v443, 1.442695
  %v445 = vpow.pop %v444
  %v446 = vadd.f32 %v445, 1.0
  %v447 = vrcp.pop %v446
  %v448 = vmul.f32 1.0, %v447
  %v449 = vmul.f32 %v448, 2.0
  %v450 = vsub.f32 %v449, 1.0
  %v451 = vmul.f32 %v448, %v360
  %453 = vrot.lane.b32.xlu0 %v450, 32
  %v454 = vpop.permute.xlu0 %453
  %v456 = vmul.f32 %v448, %v454
  %458 = vrot.lane.b32.xlu0 %v456, 32
  %v459 = vpop.permute.xlu0 %458
  %v461 = vadd.f32 %v451, %v459
  %v462 = vtanh.pop %v461
  %464 = vrot.lane.b32.xlu0 %v462, 32
  %v465 = vpop.permute.xlu0 %464
  %v467 = vmul.f32 %v448, %v465
  %469 = vrot.lane.b32.xlu0 %v467, 64
  %v470 = vpop.permute.xlu0 %469
  %v471 = vsel %vm37, %v470, 0
  %473 = vmatprep.subr.mxu0 0.0
  %474 = vmatpush1.msra.mxu0 %v15
  %475 = vmatprep.subr.mxu0 0.0
  %476 = vmatpush1.msra.mxu0 %v16
  %477 = vmatprep.subr.mxu0 0.0
  %478 = vmatpush1.msra.mxu0 %v17
  %479 = vmatprep.subr.mxu0 0.0
  %480 = vmatpush1.msra.mxu0 %v18
  %481 = vmatprep.subr.mxu0 0.0
  %482 = vmatpush1.msra.mxu0 0.0
  %483 = vmatprep.subr.mxu0 0.0
  %484 = vmatpush1.msra.mxu0 0.0
  %485 = vmatprep.subr.mxu0 0.0
  %486 = vmatpush1.msra.mxu0 0.0
  %487 = vmatprep.subr.mxu0 0.0
  %488 = vmatpush1.msra.mxu0 0.0
  %489 = vmatprep.subr.mxu0 0.0
  %490 = vmatpush1.msra.mxu0 0.0
  %491 = vmatprep.subr.mxu0 0.0
  %492 = vmatpush1.msra.mxu0 0.0
  %493 = vmatprep.subr.mxu0 0.0
  %494 = vmatpush1.msra.mxu0 0.0
  %495 = vmatprep.subr.mxu0 0.0
  %496 = vmatpush1.msra.mxu0 0.0
  %497 = vmatprep.subr.mxu0 0.0
  %498 = vmatpush1.msra.mxu0 0.0
  %499 = vmatprep.subr.mxu0 0.0
  %500 = vmatpush1.msra.mxu0 0.0
  %501 = vmatprep.subr.mxu0 0.0
  %502 = vmatpush1.msra.mxu0 0.0
  %503 = vmatprep.subr.mxu0 0.0
  %504 = vmatpush1.msra.mxu0 0.0
  %505 = vmatprep.subr.mxu0 0.0
  %506 = vmatpush1.msra.mxu0 0.0
  %507 = vmatprep.subr.mxu0 0.0
  %508 = vmatpush1.msra.mxu0 0.0
  %509 = vmatprep.subr.mxu0 0.0
  %510 = vmatpush1.msra.mxu0 0.0
  %511 = vmatprep.subr.mxu0 0.0
  %512 = vmatpush1.msra.mxu0 0.0
  %513 = vmatprep.subr.mxu0 0.0
  %514 = vmatpush1.msra.mxu0 0.0
  %515 = vmatprep.subr.mxu0 0.0
  %516 = vmatpush1.msra.mxu0 0.0
  %517 = vmatprep.subr.mxu0 0.0
  %518 = vmatpush1.msra.mxu0 0.0
  %519 = vmatprep.subr.mxu0 0.0
  %520 = vmatpush1.msra.mxu0 0.0
  %521 = vmatprep.subr.mxu0 0.0
  %522 = vmatpush1.msra.mxu0 0.0
  %523 = vmatprep.subr.mxu0 0.0
  %524 = vmatpush1.msra.mxu0 0.0
  %525 = vmatprep.subr.mxu0 0.0
  %526 = vmatpush1.msra.mxu0 0.0
  %527 = vmatprep.subr.mxu0 0.0
  %528 = vmatpush1.msra.mxu0 0.0
  %529 = vmatprep.subr.mxu0 0.0
  %530 = vmatpush1.msra.mxu0 0.0
  %531 = vmatprep.subr.mxu0 0.0
  %532 = vmatpush1.msra.mxu0 0.0
  %533 = vmatprep.subr.mxu0 0.0
  %534 = vmatpush1.msra.mxu0 0.0
  %535 = vmatprep.subr.mxu0 0.0
  %536 = vmatpush1.msra.mxu0 0.0
  %537 = vmatprep.mubr.f32.mxu0 0.0
  %538 = vmatmul.mubr.f32.gmra.mrb[0].mxu0 %v471
  %v539 = vpop.f32.mrb[0].mxu0
  %v540 = vadd.f32 0.0, %v539
  %v541 = vpop.f32.mrb[0].mxu0
  %542 = vdwg.mxu0
  %v543 = vadd.f32 %v144, %v540
  %v544 = vxor.u32 %v543, 2147483648
  %v545 = vmul.f32 %v544, 1.442695
  %v546 = vpow.pop %v545
  %v547 = vadd.f32 %v546, 1.0
  %v548 = vrcp.pop %v547
  %v549 = vmul.f32 1.0, %v548
  %v550 = vmul.f32 %v549, 2.0
  %v551 = vsub.f32 %v550, 1.0
  %v552 = vmul.f32 %v549, %v461
  %554 = vrot.lane.b32.xlu0 %v551, 32
  %v555 = vpop.permute.xlu0 %554
  %v557 = vmul.f32 %v549, %v555
  %559 = vrot.lane.b32.xlu0 %v557, 32
  %v560 = vpop.permute.xlu0 %559
  %v562 = vadd.f32 %v552, %v560
  %v563 = vtanh.pop %v562
  %565 = vrot.lane.b32.xlu0 %v563, 32
  %v566 = vpop.permute.xlu0 %565
  %v568 = vmul.f32 %v549, %v566
  %570 = vrot.lane.b32.xlu0 %v568, 64
  %v571 = vpop.permute.xlu0 %570
  %v572 = vsel %vm37, %v571, 0
  %574 = vmatprep.subr.mxu0 0.0
  %575 = vmatpush1.msra.mxu0 %v15
  %576 = vmatprep.subr.mxu0 0.0
  %577 = vmatpush1.msra.mxu0 %v16
  %578 = vmatprep.subr.mxu0 0.0
  %579 = vmatpush1.msra.mxu0 %v17
  %580 = vmatprep.subr.mxu0 0.0
  %581 = vmatpush1.msra.mxu0 %v18
  %582 = vmatprep.subr.mxu0 0.0
  %583 = vmatpush1.msra.mxu0 0.0
  %584 = vmatprep.subr.mxu0 0.0
  %585 = vmatpush1.msra.mxu0 0.0
  %586 = vmatprep.subr.mxu0 0.0
  %587 = vmatpush1.msra.mxu0 0.0
  %588 = vmatprep.subr.mxu0 0.0
  %589 = vmatpush1.msra.mxu0 0.0
  %590 = vmatprep.subr.mxu0 0.0
  %591 = vmatpush1.msra.mxu0 0.0
  %592 = vmatprep.subr.mxu0 0.0
  %593 = vmatpush1.msra.mxu0 0.0
  %594 = vmatprep.subr.mxu0 0.0
  %595 = vmatpush1.msra.mxu0 0.0
  %596 = vmatprep.subr.mxu0 0.0
  %597 = vmatpush1.msra.mxu0 0.0
  %598 = vmatprep.subr.mxu0 0.0
  %599 = vmatpush1.msra.mxu0 0.0
  %600 = vmatprep.subr.mxu0 0.0
  %601 = vmatpush1.msra.mxu0 0.0
  %602 = vmatprep.subr.mxu0 0.0
  %603 = vmatpush1.msra.mxu0 0.0
  %604 = vmatprep.subr.mxu0 0.0
  %605 = vmatpush1.msra.mxu0 0.0
  %606 = vmatprep.subr.mxu0 0.0
  %607 = vmatpush1.msra.mxu0 0.0
  %608 = vmatprep.subr.mxu0 0.0
  %609 = vmatpush1.msra.mxu0 0.0
  %610 = vmatprep.subr.mxu0 0.0
  %611 = vmatpush1.msra.mxu0 0.0
  %612 = vmatprep.subr.mxu0 0.0
  %613 = vmatpush1.msra.mxu0 0.0
  %614 = vmatprep.subr.mxu0 0.0
  %615 = vmatpush1.msra.mxu0 0.0
  %616 = vmatprep.subr.mxu0 0.0
  %617 = vmatpush1.msra.mxu0 0.0
  %618 = vmatprep.subr.mxu0 0.0
  %619 = vmatpush1.msra.mxu0 0.0
  %620 = vmatprep.subr.mxu0 0.0
  %621 = vmatpush1.msra.mxu0 0.0
  %622 = vmatprep.subr.mxu0 0.0
  %623 = vmatpush1.msra.mxu0 0.0
  %624 = vmatprep.subr.mxu0 0.0
  %625 = vmatpush1.msra.mxu0 0.0
  %626 = vmatprep.subr.mxu0 0.0
  %627 = vmatpush1.msra.mxu0 0.0
  %628 = vmatprep.subr.mxu0 0.0
  %629 = vmatpush1.msra.mxu0 0.0
  %630 = vmatprep.subr.mxu0 0.0
  %631 = vmatpush1.msra.mxu0 0.0
  %632 = vmatprep.subr.mxu0 0.0
  %633 = vmatpush1.msra.mxu0 0.0
  %634 = vmatprep.subr.mxu0 0.0
  %635 = vmatpush1.msra.mxu0 0.0
  %636 = vmatprep.subr.mxu0 0.0
  %637 = vmatpush1.msra.mxu0 0.0
  %638 = vmatprep.mubr.f32.mxu0 0.0
  %639 = vmatmul.mubr.f32.gmra.mrb[0].mxu0 %v572
  %v640 = vpop.f32.mrb[0].mxu0
  %v641 = vadd.f32 0.0, %v640
  %v642 = vpop.f32.mrb[0].mxu0
  %643 = vdwg.mxu0
  %v644 = vadd.f32 %v149, %v641
  %v645 = vxor.u32 %v644, 2147483648
  %v646 = vmul.f32 %v645, 1.442695
  %v647 = vpow.pop %v646
  %v648 = vadd.f32 %v647, 1.0
  %v649 = vrcp.pop %v648
  %v650 = vmul.f32 1.0, %v649
  %v651 = vmul.f32 %v650, 2.0
  %v652 = vsub.f32 %v651, 1.0
  %v653 = vmul.f32 %v650, %v562
  %655 = vrot.lane.b32.xlu0 %v652, 32
  %v656 = vpop.permute.xlu0 %655
  %v658 = vmul.f32 %v650, %v656
  %660 = vrot.lane.b32.xlu0 %v658, 32
  %v661 = vpop.permute.xlu0 %660
  %v663 = vadd.f32 %v653, %v661
  %v664 = vtanh.pop %v663
  %666 = vrot.lane.b32.xlu0 %v664, 32
  %v667 = vpop.permute.xlu0 %666
  %v669 = vmul.f32 %v650, %v667
  %671 = vrot.lane.b32.xlu0 %v669, 64
  %v672 = vpop.permute.xlu0 %671
  %v673 = vsel %vm37, %v672, 0
  %675 = vmatprep.subr.mxu0 0.0
  %676 = vmatpush1.msra.mxu0 %v15
  %677 = vmatprep.subr.mxu0 0.0
  %678 = vmatpush1.msra.mxu0 %v16
  %679 = vmatprep.subr.mxu0 0.0
  %680 = vmatpush1.msra.mxu0 %v17
  %681 = vmatprep.subr.mxu0 0.0
  %682 = vmatpush1.msra.mxu0 %v18
  %683 = vmatprep.subr.mxu0 0.0
  %684 = vmatpush1.msra.mxu0 0.0
  %685 = vmatprep.subr.mxu0 0.0
  %686 = vmatpush1.msra.mxu0 0.0
  %687 = vmatprep.subr.mxu0 0.0
  %688 = vmatpush1.msra.mxu0 0.0
  %689 = vmatprep.subr.mxu0 0.0
  %690 = vmatpush1.msra.mxu0 0.0
  %691 = vmatprep.subr.mxu0 0.0
  %692 = vmatpush1.msra.mxu0 0.0
  %693 = vmatprep.subr.mxu0 0.0
  %694 = vmatpush1.msra.mxu0 0.0
  %695 = vmatprep.subr.mxu0 0.0
  %696 = vmatpush1.msra.mxu0 0.0
  %697 = vmatprep.subr.mxu0 0.0
  %698 = vmatpush1.msra.mxu0 0.0
  %699 = vmatprep.subr.mxu0 0.0
  %700 = vmatpush1.msra.mxu0 0.0
  %701 = vmatprep.subr.mxu0 0.0
  %702 = vmatpush1.msra.mxu0 0.0
  %703 = vmatprep.subr.mxu0 0.0
  %704 = vmatpush1.msra.mxu0 0.0
  %705 = vmatprep.subr.mxu0 0.0
  %706 = vmatpush1.msra.mxu0 0.0
  %707 = vmatprep.subr.mxu0 0.0
  %708 = vmatpush1.msra.mxu0 0.0
  %709 = vmatprep.subr.mxu0 0.0
  %710 = vmatpush1.msra.mxu0 0.0
  %711 = vmatprep.subr.mxu0 0.0
  %712 = vmatpush1.msra.mxu0 0.0
  %713 = vmatprep.subr.mxu0 0.0
  %714 = vmatpush1.msra.mxu0 0.0
  %715 = vmatprep.subr.mxu0 0.0
  %716 = vmatpush1.msra.mxu0 0.0
  %717 = vmatprep.subr.mxu0 0.0
  %718 = vmatpush1.msra.mxu0 0.0
  %719 = vmatprep.subr.mxu0 0.0
  %720 = vmatpush1.msra.mxu0 0.0
  %721 = vmatprep.subr.mxu0 0.0
  %722 = vmatpush1.msra.mxu0 0.0
  %723 = vmatprep.subr.mxu0 0.0
  %724 = vmatpush1.msra.mxu0 0.0
  %725 = vmatprep.subr.mxu0 0.0
  %726 = vmatpush1.msra.mxu0 0.0
  %727 = vmatprep.subr.mxu0 0.0
  %728 = vmatpush1.msra.mxu0 0.0
  %729 = vmatprep.subr.mxu0 0.0
  %730 = vmatpush1.msra.mxu0 0.0
  %731 = vmatprep.subr.mxu0 0.0
  %732 = vmatpush1.msra.mxu0 0.0
  %733 = vmatprep.subr.mxu0 0.0
  %734 = vmatpush1.msra.mxu0 0.0
  %735 = vmatprep.subr.mxu0 0.0
  %736 = vmatpush1.msra.mxu0 0.0
  %737 = vmatprep.subr.mxu0 0.0
  %738 = vmatpush1.msra.mxu0 0.0
  %739 = vmatprep.mubr.f32.mxu0 0.0
  %740 = vmatmul.mubr.f32.gmra.mrb[0].mxu0 %v673
  %v741 = vpop.f32.mrb[0].mxu0
  %v742 = vadd.f32 0.0, %v741
  %v743 = vpop.f32.mrb[0].mxu0
  %744 = vdwg.mxu0
  %v745 = vadd.f32 %v154, %v742
  %v746 = vxor.u32 %v745, 2147483648
  %v747 = vmul.f32 %v746, 1.442695
  %v748 = vpow.pop %v747
  %v749 = vadd.f32 %v748, 1.0
  %v750 = vrcp.pop %v749
  %v751 = vmul.f32 1.0, %v750
  %v752 = vmul.f32 %v751, 2.0
  %v753 = vsub.f32 %v752, 1.0
  %v754 = vmul.f32 %v751, %v663
  %756 = vrot.lane.b32.xlu0 %v753, 32
  %v757 = vpop.permute.xlu0 %756
  %v759 = vmul.f32 %v751, %v757
  %761 = vrot.lane.b32.xlu0 %v759, 32
  %v762 = vpop.permute.xlu0 %761
  %v764 = vadd.f32 %v754, %v762
  %v765 = vtanh.pop %v764
  %767 = vrot.lane.b32.xlu0 %v765, 32
  %v768 = vpop.permute.xlu0 %767
  %v770 = vmul.f32 %v751, %v768
  %772 = vrot.lane.b32.xlu0 %v770, 64
  %v773 = vpop.permute.xlu0 %772
  %v774 = vsel %vm37, %v773, 0
  %776 = vmatprep.subr.mxu0 0.0
  %777 = vmatpush1.msra.mxu0 %v15
  %778 = vmatprep.subr.mxu0 0.0
  %779 = vmatpush1.msra.mxu0 %v16
  %780 = vmatprep.subr.mxu0 0.0
  %781 = vmatpush1.msra.mxu0 %v17
  %782 = vmatprep.subr.mxu0 0.0
  %783 = vmatpush1.msra.mxu0 %v18
  %784 = vmatprep.subr.mxu0 0.0
  %785 = vmatpush1.msra.mxu0 0.0
  %786 = vmatprep.subr.mxu0 0.0
  %787 = vmatpush1.msra.mxu0 0.0
  %788 = vmatprep.subr.mxu0 0.0
  %789 = vmatpush1.msra.mxu0 0.0
  %790 = vmatprep.subr.mxu0 0.0
  %791 = vmatpush1.msra.mxu0 0.0
  %792 = vmatprep.subr.mxu0 0.0
  %793 = vmatpush1.msra.mxu0 0.0
  %794 = vmatprep.subr.mxu0 0.0
  %795 = vmatpush1.msra.mxu0 0.0
  %796 = vmatprep.subr.mxu0 0.0
  %797 = vmatpush1.msra.mxu0 0.0
  %798 = vmatprep.subr.mxu0 0.0
  %799 = vmatpush1.msra.mxu0 0.0
  %800 = vmatprep.subr.mxu0 0.0
  %801 = vmatpush1.msra.mxu0 0.0
  %802 = vmatprep.subr.mxu0 0.0
  %803 = vmatpush1.msra.mxu0 0.0
  %804 = vmatprep.subr.mxu0 0.0
  %805 = vmatpush1.msra.mxu0 0.0
  %806 = vmatprep.subr.mxu0 0.0
  %807 = vmatpush1.msra.mxu0 0.0
  %808 = vmatprep.subr.mxu0 0.0
  %809 = vmatpush1.msra.mxu0 0.0
  %810 = vmatprep.subr.mxu0 0.0
  %811 = vmatpush1.msra.mxu0 0.0
  %812 = vmatprep.subr.mxu0 0.0
  %813 = vmatpush1.msra.mxu0 0.0
  %814 = vmatprep.subr.mxu0 0.0
  %815 = vmatpush1.msra.mxu0 0.0
  %816 = vmatprep.subr.mxu0 0.0
  %817 = vmatpush1.msra.mxu0 0.0
  %818 = vmatprep.subr.mxu0 0.0
  %819 = vmatpush1.msra.mxu0 0.0
  %820 = vmatprep.subr.mxu0 0.0
  %821 = vmatpush1.msra.mxu0 0.0
  %822 = vmatprep.subr.mxu0 0.0
  %823 = vmatpush1.msra.mxu0 0.0
  %824 = vmatprep.subr.mxu0 0.0
  %825 = vmatpush1.msra.mxu0 0.0
  %826 = vmatprep.subr.mxu0 0.0
  %827 = vmatpush1.msra.mxu0 0.0
  %828 = vmatprep.subr.mxu0 0.0
  %829 = vmatpush1.msra.mxu0 0.0
  %830 = vmatprep.subr.mxu0 0.0
  %831 = vmatpush1.msra.mxu0 0.0
  %832 = vmatprep.subr.mxu0 0.0
  %833 = vmatpush1.msra.mxu0 0.0
  %834 = vmatprep.subr.mxu0 0.0
  %835 = vmatpush1.msra.mxu0 0.0
  %836 = vmatprep.subr.mxu0 0.0
  %837 = vmatpush1.msra.mxu0 0.0
  %838 = vmatprep.subr.mxu0 0.0
  %839 = vmatpush1.msra.mxu0 0.0
  %840 = vmatprep.mubr.f32.mxu0 0.0
  %841 = vmatmul.mubr.f32.gmra.mrb[0].mxu0 %v774
  %v842 = vpop.f32.mrb[0].mxu0
  %v843 = vadd.f32 0.0, %v842
  %v844 = vpop.f32.mrb[0].mxu0
  %845 = vdwg.mxu0
  %v846 = vadd.f32 %v159, %v843
  %v847 = vxor.u32 %v846, 2147483648
  %v848 = vmul.f32 %v847, 1.442695
  %v849 = vpow.pop %v848
  %v850 = vadd.f32 %v849, 1.0
  %v851 = vrcp.pop %v850
  %v852 = vmul.f32 1.0, %v851
  %v853 = vmul.f32 %v852, 2.0
  %v854 = vsub.f32 %v853, 1.0
  %v855 = vmul.f32 %v852, %v764
  %857 = vrot.lane.b32.xlu0 %v854, 32
  %v858 = vpop.permute.xlu0 %857
  %v860 = vmul.f32 %v852, %v858
  %862 = vrot.lane.b32.xlu0 %v860, 32
  %v863 = vpop.permute.xlu0 %862
  %v865 = vadd.f32 %v855, %v863
  %v866 = vtanh.pop %v865
  %868 = vrot.lane.b32.xlu0 %v866, 32
  %v869 = vpop.permute.xlu0 %868
  %v871 = vmul.f32 %v852, %v869
  %873 = vrot.lane.b32.xlu0 %v871, 64
  %v874 = vpop.permute.xlu0 %873
  %v875 = vsel %vm37, %v874, 0
  %877 = vmatprep.subr.mxu0 0.0
  %878 = vmatpush1.msra.mxu0 %v15
  %879 = vmatprep.subr.mxu0 0.0
  %880 = vmatpush1.msra.mxu0 %v16
  %881 = vmatprep.subr.mxu0 0.0
  %882 = vmatpush1.msra.mxu0 %v17
  %883 = vmatprep.subr.mxu0 0.0
  %884 = vmatpush1.msra.mxu0 %v18
  %885 = vmatprep.subr.mxu0 0.0
  %886 = vmatpush1.msra.mxu0 0.0
  %887 = vmatprep.subr.mxu0 0.0
  %888 = vmatpush1.msra.mxu0 0.0
  %889 = vmatprep.subr.mxu0 0.0
  %890 = vmatpush1.msra.mxu0 0.0
  %891 = vmatprep.subr.mxu0 0.0
  %892 = vmatpush1.msra.mxu0 0.0
  %893 = vmatprep.subr.mxu0 0.0
  %894 = vmatpush1.msra.mxu0 0.0
  %895 = vmatprep.subr.mxu0 0.0
  %896 = vmatpush1.msra.mxu0 0.0
  %897 = vmatprep.subr.mxu0 0.0
  %898 = vmatpush1.msra.mxu0 0.0
  %899 = vmatprep.subr.mxu0 0.0
  %900 = vmatpush1.msra.mxu0 0.0
  %901 = vmatprep.subr.mxu0 0.0
  %902 = vmatpush1.msra.mxu0 0.0
  %903 = vmatprep.subr.mxu0 0.0
  %904 = vmatpush1.msra.mxu0 0.0
  %905 = vmatprep.subr.mxu0 0.0
  %906 = vmatpush1.msra.mxu0 0.0
  %907 = vmatprep.subr.mxu0 0.0
  %908 = vmatpush1.msra.mxu0 0.0
  %909 = vmatprep.subr.mxu0 0.0
  %910 = vmatpush1.msra.mxu0 0.0
  %911 = vmatprep.subr.mxu0 0.0
  %912 = vmatpush1.msra.mxu0 0.0
  %913 = vmatprep.subr.mxu0 0.0
  %914 = vmatpush1.msra.mxu0 0.0
  %915 = vmatprep.subr.mxu0 0.0
  %916 = vmatpush1.msra.mxu0 0.0
  %917 = vmatprep.subr.mxu0 0.0
  %918 = vmatpush1.msra.mxu0 0.0
  %919 = vmatprep.subr.mxu0 0.0
  %920 = vmatpush1.msra.mxu0 0.0
  %921 = vmatprep.subr.mxu0 0.0
  %922 = vmatpush1.msra.mxu0 0.0
  %923 = vmatprep.subr.mxu0 0.0
  %924 = vmatpush1.msra.mxu0 0.0
  %925 = vmatprep.subr.mxu0 0.0
  %926 = vmatpush1.msra.mxu0 0.0
  %927 = vmatprep.subr.mxu0 0.0
  %928 = vmatpush1.msra.mxu0 0.0
  %929 = vmatprep.subr.mxu0 0.0
  %930 = vmatpush1.msra.mxu0 0.0
  %931 = vmatprep.subr.mxu0 0.0
  %932 = vmatpush1.msra.mxu0 0.0
  %933 = vmatprep.subr.mxu0 0.0
  %934 = vmatpush1.msra.mxu0 0.0
  %935 = vmatprep.subr.mxu0 0.0
  %936 = vmatpush1.msra.mxu0 0.0
  %937 = vmatprep.subr.mxu0 0.0
  %938 = vmatpush1.msra.mxu0 0.0
  %939 = vmatprep.subr.mxu0 0.0
  %940 = vmatpush1.msra.mxu0 0.0
  %941 = vmatprep.mubr.f32.mxu0 0.0
  %942 = vmatmul.mubr.f32.gmra.mrb[0].mxu0 %v875
  %v943 = vpop.f32.mrb[0].mxu0
  %v944 = vadd.f32 0.0, %v943
  %v945 = vpop.f32.mrb[0].mxu0
  %946 = vdwg.mxu0
  %v947 = vadd.f32 %v164, %v944
  %v948 = vxor.u32 %v947, 2147483648
  %v949 = vmul.f32 %v948, 1.442695
  %v950 = vpow.pop %v949
  %v951 = vadd.f32 %v950, 1.0
  %v952 = vrcp.pop %v951
  %v953 = vmul.f32 1.0, %v952
  %v954 = vmul.f32 %v953, 2.0
  %v955 = vsub.f32 %v954, 1.0
  %v956 = vmul.f32 %v953, %v865
  %958 = vrot.lane.b32.xlu0 %v955, 32
  %v959 = vpop.permute.xlu0 %958
  %v961 = vmul.f32 %v953, %v959
  %963 = vrot.lane.b32.xlu0 %v961, 32
  %v964 = vpop.permute.xlu0 %963
  %v966 = vadd.f32 %v956, %v964
  %v967 = vtanh.pop %v966
  %969 = vrot.lane.b32.xlu0 %v967, 32
  %v970 = vpop.permute.xlu0 %969
  %v972 = vmul.f32 %v953, %v970
  %v973 = vlaneseq
  %v974 = vshrl.u32 %v973, 7
  %v975 = vsub.s32 0, %v974
  %v976 = vrot.slane %v24, %v975
  %978 = vrot.lane.b32.xlu0 %v972, 64
  %v979 = vpop.permute.xlu0 %978
  %v980 = vsel %vm37, %v979, 0
  %982 = vmatprep.subr.mxu0 0.0
  %983 = vmatpush1.msra.mxu0 %v20
  %984 = vmatprep.subr.mxu0 0.0
  %985 = vmatpush1.msra.mxu0 %v21
  %986 = vmatprep.subr.mxu0 0.0
  %987 = vmatpush1.msra.mxu0 %v22
  %988 = vmatprep.subr.mxu0 0.0
  %989 = vmatpush1.msra.mxu0 %v23
  %990 = vmatprep.subr.mxu0 0.0
  %991 = vmatpush1.msra.mxu0 0.0
  %992 = vmatprep.subr.mxu0 0.0
  %993 = vmatpush1.msra.mxu0 0.0
  %994 = vmatprep.subr.mxu0 0.0
  %995 = vmatpush1.msra.mxu0 0.0
  %996 = vmatprep.subr.mxu0 0.0
  %997 = vmatpush1.msra.mxu0 0.0
  %998 = vmatprep.subr.mxu0 0.0
  %999 = vmatpush1.msra.mxu0 0.0
  %1000 = vmatprep.subr.mxu0 0.0
  %1001 = vmatpush1.msra.mxu0 0.0
  %1002 = vmatprep.subr.mxu0 0.0
  %1003 = vmatpush1.msra.mxu0 0.0
  %1004 = vmatprep.subr.mxu0 0.0
  %1005 = vmatpush1.msra.mxu0 0.0
  %1006 = vmatprep.subr.mxu0 0.0
  %1007 = vmatpush1.msra.mxu0 0.0
  %1008 = vmatprep.subr.mxu0 0.0
  %1009 = vmatpush1.msra.mxu0 0.0
  %1010 = vmatprep.subr.mxu0 0.0
  %1011 = vmatpush1.msra.mxu0 0.0
  %1012 = vmatprep.subr.mxu0 0.0
  %1013 = vmatpush1.msra.mxu0 0.0
  %1014 = vmatprep.subr.mxu0 0.0
  %1015 = vmatpush1.msra.mxu0 0.0
  %1016 = vmatprep.subr.mxu0 0.0
  %1017 = vmatpush1.msra.mxu0 0.0
  %1018 = vmatprep.subr.mxu0 0.0
  %1019 = vmatpush1.msra.mxu0 0.0
  %1020 = vmatprep.subr.mxu0 0.0
  %1021 = vmatpush1.msra.mxu0 0.0
  %1022 = vmatprep.subr.mxu0 0.0
  %1023 = vmatpush1.msra.mxu0 0.0
  %1024 = vmatprep.subr.mxu0 0.0
  %1025 = vmatpush1.msra.mxu0 0.0
  %1026 = vmatprep.subr.mxu0 0.0
  %1027 = vmatpush1.msra.mxu0 0.0
  %1028 = vmatprep.subr.mxu0 0.0
  %1029 = vmatpush1.msra.mxu0 0.0
  %1030 = vmatprep.subr.mxu0 0.0
  %1031 = vmatpush1.msra.mxu0 0.0
  %1032 = vmatprep.subr.mxu0 0.0
  %1033 = vmatpush1.msra.mxu0 0.0
  %1034 = vmatprep.subr.mxu0 0.0
  %1035 = vmatpush1.msra.mxu0 0.0
  %1036 = vmatprep.subr.mxu0 0.0
  %1037 = vmatpush1.msra.mxu0 0.0
  %1038 = vmatprep.subr.mxu0 0.0
  %1039 = vmatpush1.msra.mxu0 0.0
  %1040 = vmatprep.subr.mxu0 0.0
  %1041 = vmatpush1.msra.mxu0 0.0
  %1042 = vmatprep.subr.mxu0 0.0
  %1043 = vmatpush1.msra.mxu0 0.0
  %1044 = vmatprep.subr.mxu0 0.0
  %1045 = vmatpush1.msra.mxu0 0.0
  %1046 = vmatprep.mubr.f32.mxu0 0.0
  %1047 = vmatmul.mubr.f32.gmra.mrb[0].mxu0 %v980
  %v1048 = vpop.f32.mrb[0].mxu0
  %v1049 = vadd.f32 %v976, %v1048
  %v1050 = vpop.f32.mrb[0].mxu0
  %1051 = vdwg.mxu0
  %1052 = vst [vmem:[%s2] sm:$0xff] %v1049
  // Predicated region
  $region10: #{forward.1} parent=0 // pred_check
    _
  $region11: #{forward.1} parent=0 // pred_check_branch
    %1054 = sbr.rel (0) target = $region13
  $region12: #{forward.1} parent=0 // pred_region
    _
  $region13: #{forward.1} parent=0 // pred_fallthru
    _
  // Predicated region
  $region14: #{forward.1} parent=0 // pred_check
    _
  $region15: #{forward.1} parent=0 // pred_check_branch
    %1056 = sbr.rel (0) target = $region17
  $region16: #{forward.1} parent=0 // pred_region
    _
  $region17: #{forward.1} parent=0 // pred_fallthru
    _

</llo_original>
